<compile_context>
chip_gen: v5e
topology: v5e:2x2
jax: 0.10.0
libtpu: 0.0.40
codegen_flags: <defaults>
</compile_context>

<pallas_src>
import functools

import jax
import jax.numpy as jnp
from jax.experimental import pallas as pl
from jax.experimental.pallas import tpu as pltpu

_LANE = 128      # lane width: last feature dim padded to a multiple of this
_SUBLANE = 8     # sublane width: batch dim padded to a multiple of this
_MAX_TILE_B = 512  # batch tile (rows) per grid step


def _round_up(n, m):
    return ((n + m - 1) // m) * m


def _mlp_kernel(x_ref, *args):
    """Fused MLP body.

    args = (w_0, b_0, w_1, b_1, ..., w_L, b_L, o_ref)
    Static Python loop over layers (layer count is small); intermediates stay
    in VMEM / vregs — tanh on every layer except the last.
    """
    o_ref = args[-1]
    wb = args[:-1]
    n_layers = len(wb) // 2

    h = x_ref[...]
    for l in range(n_layers):
        w = wb[2 * l][...]
        b = wb[2 * l + 1][...]
        h = jnp.dot(h, w, preferred_element_type=jnp.float32) + b
        if l != n_layers - 1:
            h = jnp.tanh(h)
    o_ref[...] = h.astype(o_ref.dtype)


def mlp_forward(params, x):
    """Replicates MLP.forward: tanh on all layers except the last.

    params: list of (w, b) with w shaped (fan_in, fan_out), b shaped (fan_out,)
    x:      (batch, in_features) float32
    """
    B, F_in = x.shape
    F_out = params[-1][0].shape[1]

    # Padded (lane/sublane-dense) shapes.
    F_in_p = _round_up(F_in, _LANE)
    F_out_p = _round_up(F_out, _LANE)
    B_p = _round_up(B, _SUBLANE)
    tile_b = min(_MAX_TILE_B, B_p)
    B_p = _round_up(B_p, tile_b)          # make batch divisible by the tile
    grid = (B_p // tile_b,)

    x_p = jnp.zeros((B_p, F_in_p), x.dtype).at[:B, :F_in].set(x)

    # Zero-pad every weight/bias to lane-dense shapes.
    flat_wb = []
    wb_specs = []
    for (w, b) in params:
        fi, fo = w.shape
        fi_p, fo_p = _round_up(fi, _LANE), _round_up(fo, _LANE)
        w_p = jnp.zeros((fi_p, fo_p), jnp.float32).at[:fi, :fo].set(w)
        b_p = jnp.zeros((1, fo_p), jnp.float32).at[0, :fo].set(b)
        flat_wb += [w_p, b_p]
        # Weights/biases resident across all batch tiles (same block every step).
        wb_specs.append(pl.BlockSpec((fi_p, fo_p), lambda i: (0, 0)))
        wb_specs.append(pl.BlockSpec((1, fo_p), lambda i: (0, 0)))

    out_p = pl.pallas_call(
        _mlp_kernel,
        out_shape=jax.ShapeDtypeStruct((B_p, F_out_p), jnp.float32),
        grid=grid,
        in_specs=[pl.BlockSpec((tile_b, F_in_p), lambda i: (i, 0))] + wb_specs,
        out_specs=pl.BlockSpec((tile_b, F_out_p), lambda i: (i, 0)),
        compiler_params=pltpu.CompilerParams(
            dimension_semantics=("parallel",),  # batch tiles are independent
        ),
    )(x_p, *flat_wb)

    return out_p[:B, :F_out]


def init_mlp_params(key, in_features, out_features, num_layers, num_neurons):
    """Deterministic init mirroring torch.nn.Linear defaults:
    U(-1/sqrt(fan_in), 1/sqrt(fan_in)) for both weight and bias.
    Weights are stored as (fan_in, fan_out)."""
    params = []

    def make_layer(k, fan_in, fan_out):
        kw, kb = jax.random.split(k)
        bound = 1.0 / jnp.sqrt(fan_in)
        w = jax.random.uniform(kw, (fan_in, fan_out), jnp.float32, -bound, bound)
        b = jax.random.uniform(kb, (fan_out,), jnp.float32, -bound, bound)
        return w, b

    keys = jax.random.split(key, num_layers + 1)
    # layer_input: in_features -> num_neurons
    params.append(make_layer(keys[0], in_features, num_neurons))
    # hidden layers: num_neurons -> num_neurons, (num_layers - 1) of them
    for ii in range(num_layers - 1):
        params.append(make_layer(keys[1 + ii], num_neurons, num_neurons))
    # layer_output: num_neurons -> out_features
    params.append(make_layer(keys[num_layers], num_neurons, out_features))
    return params


if __name__ == "__main__":
    # Small shapes consistent with the module.
    batch = 8
    in_features = 16
    out_features = 4
    num_layers = 3
    num_neurons = 32

    key = jax.random.PRNGKey(0)
    kx, kp = jax.random.split(key)
    x = jax.random.normal(kx, (batch, in_features), dtype=jnp.float32)

    params = init_mlp_params(kp, in_features, out_features, num_layers, num_neurons)

    fwd = jax.jit(mlp_forward)
    out = fwd(params, x)
    out = jax.block_until_ready(out)

    # Reference check against plain JAX (same math as the PyTorch forward).
    h_ref = x
    for idx, (w, b) in enumerate(params):
        h_ref = h_ref @ w + b
        if idx != len(params) - 1:
            h_ref = jnp.tanh(h_ref)
    assert out.shape == (batch, out_features)
    assert jnp.allclose(out, h_ref, atol=1e-5, rtol=1e-5)

    print("KERNEL_OK")
</pallas_src>

<mosaic_0001>
module attributes {stable_mosaic.version = 11 : i64} {
  func.func @_mlp_kernel(%arg0: i32, %arg1: memref<8x128xf32, #tpu.memory_space<vmem>>, %arg2: memref<128x128xf32, #tpu.memory_space<vmem>>, %arg3: memref<1x128xf32, #tpu.memory_space<vmem>>, %arg4: memref<128x128xf32, #tpu.memory_space<vmem>>, %arg5: memref<1x128xf32, #tpu.memory_space<vmem>>, %arg6: memref<128x128xf32, #tpu.memory_space<vmem>>, %arg7: memref<1x128xf32, #tpu.memory_space<vmem>>, %arg8: memref<128x128xf32, #tpu.memory_space<vmem>>, %arg9: memref<1x128xf32, #tpu.memory_space<vmem>>, %arg10: memref<8x128xf32, #tpu.memory_space<vmem>>) attributes {dimension_semantics = [#tpu.dimension_semantics<parallel>], iteration_bounds = array<i64: 1>, scalar_prefetch = 0 : i64, scratch_operands = 0 : i64, tpu.core_type = #tpu.core_type<tc>, window_params = [{transform_indices = @transform_0, window_bounds = array<i64: 8, 128>}, {pipeline_mode = #tpu.pipeline_mode<synchronous>, transform_indices = @transform_1, window_bounds = array<i64: 128, 128>}, {pipeline_mode = #tpu.pipeline_mode<synchronous>, transform_indices = @transform_2, window_bounds = array<i64: 1, 128>}, {pipeline_mode = #tpu.pipeline_mode<synchronous>, transform_indices = @transform_3, window_bounds = array<i64: 128, 128>}, {pipeline_mode = #tpu.pipeline_mode<synchronous>, transform_indices = @transform_4, window_bounds = array<i64: 1, 128>}, {pipeline_mode = #tpu.pipeline_mode<synchronous>, transform_indices = @transform_5, window_bounds = array<i64: 128, 128>}, {pipeline_mode = #tpu.pipeline_mode<synchronous>, transform_indices = @transform_6, window_bounds = array<i64: 1, 128>}, {pipeline_mode = #tpu.pipeline_mode<synchronous>, transform_indices = @transform_7, window_bounds = array<i64: 128, 128>}, {pipeline_mode = #tpu.pipeline_mode<synchronous>, transform_indices = @transform_8, window_bounds = array<i64: 1, 128>}, {transform_indices = @transform_9, window_bounds = array<i64: 8, 128>}]} {
    %c0 = arith.constant 0 : index
    %c0_0 = arith.constant 0 : index
    %0 = vector.load %arg1[%c0, %c0_0] : memref<8x128xf32, #tpu.memory_space<vmem>>, vector<8x128xf32>
    %c0_1 = arith.constant 0 : index
    %c0_2 = arith.constant 0 : index
    %1 = vector.load %arg2[%c0_1, %c0_2] : memref<128x128xf32, #tpu.memory_space<vmem>>, vector<128x128xf32>
    %c0_3 = arith.constant 0 : index
    %c0_4 = arith.constant 0 : index
    %2 = vector.load %arg3[%c0_3, %c0_4] : memref<1x128xf32, #tpu.memory_space<vmem>>, vector<1x128xf32>
    %cst = arith.constant dense<0.000000e+00> : vector<8x128xf32>
    %3 = tpu.matmul %0, %1, %cst {dimension_numbers = #tpu.dot_dimension_numbers<[1], [0], [0], [1], [0, 0, 1, 1], [], []>} : vector<8x128xf32>, vector<128x128xf32>, vector<8x128xf32> -> vector<8x128xf32>
    %4 = vector.broadcast %2 : vector<1x128xf32> to vector<8x128xf32>
    %5 = arith.addf %3, %4 : vector<8x128xf32>
    %6 = math.tanh %5 : vector<8x128xf32>
    %c0_5 = arith.constant 0 : index
    %c0_6 = arith.constant 0 : index
    %7 = vector.load %arg4[%c0_5, %c0_6] : memref<128x128xf32, #tpu.memory_space<vmem>>, vector<128x128xf32>
    %c0_7 = arith.constant 0 : index
    %c0_8 = arith.constant 0 : index
    %8 = vector.load %arg5[%c0_7, %c0_8] : memref<1x128xf32, #tpu.memory_space<vmem>>, vector<1x128xf32>
    %cst_9 = arith.constant dense<0.000000e+00> : vector<8x128xf32>
    %9 = tpu.matmul %6, %7, %cst_9 {dimension_numbers = #tpu.dot_dimension_numbers<[1], [0], [0], [1], [0, 0, 1, 1], [], []>} : vector<8x128xf32>, vector<128x128xf32>, vector<8x128xf32> -> vector<8x128xf32>
    %10 = vector.broadcast %8 : vector<1x128xf32> to vector<8x128xf32>
    %11 = arith.addf %9, %10 : vector<8x128xf32>
    %12 = math.tanh %11 : vector<8x128xf32>
    %c0_10 = arith.constant 0 : index
    %c0_11 = arith.constant 0 : index
    %13 = vector.load %arg6[%c0_10, %c0_11] : memref<128x128xf32, #tpu.memory_space<vmem>>, vector<128x128xf32>
    %c0_12 = arith.constant 0 : index
    %c0_13 = arith.constant 0 : index
    %14 = vector.load %arg7[%c0_12, %c0_13] : memref<1x128xf32, #tpu.memory_space<vmem>>, vector<1x128xf32>
    %cst_14 = arith.constant dense<0.000000e+00> : vector<8x128xf32>
    %15 = tpu.matmul %12, %13, %cst_14 {dimension_numbers = #tpu.dot_dimension_numbers<[1], [0], [0], [1], [0, 0, 1, 1], [], []>} : vector<8x128xf32>, vector<128x128xf32>, vector<8x128xf32> -> vector<8x128xf32>
    %16 = vector.broadcast %14 : vector<1x128xf32> to vector<8x128xf32>
    %17 = arith.addf %15, %16 : vector<8x128xf32>
    %18 = math.tanh %17 : vector<8x128xf32>
    %c0_15 = arith.constant 0 : index
    %c0_16 = arith.constant 0 : index
    %19 = vector.load %arg8[%c0_15, %c0_16] : memref<128x128xf32, #tpu.memory_space<vmem>>, vector<128x128xf32>
    %c0_17 = arith.constant 0 : index
    %c0_18 = arith.constant 0 : index
    %20 = vector.load %arg9[%c0_17, %c0_18] : memref<1x128xf32, #tpu.memory_space<vmem>>, vector<1x128xf32>
    %cst_19 = arith.constant dense<0.000000e+00> : vector<8x128xf32>
    %21 = tpu.matmul %18, %19, %cst_19 {dimension_numbers = #tpu.dot_dimension_numbers<[1], [0], [0], [1], [0, 0, 1, 1], [], []>} : vector<8x128xf32>, vector<128x128xf32>, vector<8x128xf32> -> vector<8x128xf32>
    %22 = vector.broadcast %20 : vector<1x128xf32> to vector<8x128xf32>
    %23 = arith.addf %21, %22 : vector<8x128xf32>
    %c0_20 = arith.constant 0 : index
    %c0_21 = arith.constant 0 : index
    %24 = vector.load %arg10[%c0_20, %c0_21] : memref<8x128xf32, #tpu.memory_space<vmem>>, vector<8x128xf32>
    tpu.vector_store %arg10[%c0_20, %c0_21], %23 {strides = array<i32>} : memref<8x128xf32, #tpu.memory_space<vmem>>, vector<8x128xf32>,
    return
  }
  func.func @transform_0(%arg0: i32) -> (i32, i32) {
    %c0_i32 = arith.constant 0 : i32
    %c0_i32_0 = arith.constant 0 : i32
    return %arg0, %c0_i32 : i32, i32
  }
  func.func @transform_1(%arg0: i32) -> (i32, i32) {
    %c0_i32 = arith.constant 0 : i32
    %c0_i32_0 = arith.constant 0 : i32
    %c0_i32_1 = arith.constant 0 : i32
    return %c0_i32, %c0_i32_0 : i32, i32
  }
  func.func @transform_2(%arg0: i32) -> (i32, i32) {
    %c0_i32 = arith.constant 0 : i32
    %c0_i32_0 = arith.constant 0 : i32
    %c0_i32_1 = arith.constant 0 : i32
    return %c0_i32, %c0_i32_0 : i32, i32
  }
  func.func @transform_3(%arg0: i32) -> (i32, i32) {
    %c0_i32 = arith.constant 0 : i32
    %c0_i32_0 = arith.constant 0 : i32
    %c0_i32_1 = arith.constant 0 : i32
    return %c0_i32, %c0_i32_0 : i32, i32
  }
  func.func @transform_4(%arg0: i32) -> (i32, i32) {
    %c0_i32 = arith.constant 0 : i32
    %c0_i32_0 = arith.constant 0 : i32
    %c0_i32_1 = arith.constant 0 : i32
    return %c0_i32, %c0_i32_0 : i32, i32
  }
  func.func @transform_5(%arg0: i32) -> (i32, i32) {
    %c0_i32 = arith.constant 0 : i32
    %c0_i32_0 = arith.constant 0 : i32
    %c0_i32_1 = arith.constant 0 : i32
    return %c0_i32, %c0_i32_0 : i32, i32
  }
  func.func @transform_6(%arg0: i32) -> (i32, i32) {
    %c0_i32 = arith.constant 0 : i32
    %c0_i32_0 = arith.constant 0 : i32
    %c0_i32_1 = arith.constant 0 : i32
    return %c0_i32, %c0_i32_0 : i32, i32
  }
  func.func @transform_7(%arg0: i32) -> (i32, i32) {
    %c0_i32 = arith.constant 0 : i32
    %c0_i32_0 = arith.constant 0 : i32
    %c0_i32_1 = arith.constant 0 : i32
    return %c0_i32, %c0_i32_0 : i32, i32
  }
  func.func @transform_8(%arg0: i32) -> (i32, i32) {
    %c0_i32 = arith.constant 0 : i32
    %c0_i32_0 = arith.constant 0 : i32
    %c0_i32_1 = arith.constant 0 : i32
    return %c0_i32, %c0_i32_0 : i32, i32
  }
  func.func @transform_9(%arg0: i32) -> (i32, i32) {
    %c0_i32 = arith.constant 0 : i32
    %c0_i32_0 = arith.constant 0 : i32
    return %arg0, %c0_i32 : i32, i32
  }
}

</mosaic_0001>

<llo_original>
// kernel: mlp_forward.1
$region0: #{mlp_forward.1}
  #allocation0 [shape = 'u32[]', space=smem, size = 0x4, offset = 0x4, fixed_abs, tag = 'smem constant byte address 0x4 - core index']
  #allocation1 [shape = 'u32[72,128]{1,0:T(1,128)}', space=vmem, size = 0x9000, scoped, tag = 'internal scratch']
  %s0 = inlined_call_operand.vmem [shape: f32[8,128], index: 0, kind: input, shape index: {}]
  %s1 = inlined_call_operand.vmem [shape: f32[128,128], index: 1, kind: input, shape index: {}]
  %s2 = inlined_call_operand.vmem [shape: f32[1,128], index: 2, kind: input, shape index: {}]
  %s3 = inlined_call_operand.vmem [shape: f32[128,128], index: 3, kind: input, shape index: {}]
  %s4 = inlined_call_operand.vmem [shape: f32[1,128], index: 4, kind: input, shape index: {}]
  %s5 = inlined_call_operand.vmem [shape: f32[128,128], index: 5, kind: input, shape index: {}]
  %s6 = inlined_call_operand.vmem [shape: f32[1,128], index: 6, kind: input, shape index: {}]
  %s7 = inlined_call_operand.vmem [shape: f32[128,128], index: 7, kind: input, shape index: {}]
  %s8 = inlined_call_operand.vmem [shape: f32[1,128], index: 8, kind: input, shape index: {}]
  %s9 = inlined_call_operand.vmem [shape: f32[8,128], index: 9, kind: output, shape index: {}]
  %s10 = sld [smem:[#allocation0]]
  $region46: #{mlp_forward.1} parent=0
    _
  %s12 = ssub.s32 1, %s10
  %s13 = scalar_select 0, %s12, %s10
  // Predicated region
  $region2: #{mlp_forward.1} parent=0 // pred_check
    _
  $region3: #{mlp_forward.1} parent=0 // pred_check_branch
    %15 = sbr.rel (0) target = $region5
  $region4: #{mlp_forward.1} parent=0 // pred_region
    _
  $region5: #{mlp_forward.1} parent=0 // pred_fallthru
    _
  // Predicated region
  $region6: #{mlp_forward.1} parent=0 // pred_check
    _
  $region7: #{mlp_forward.1} parent=0 // pred_check_branch
    %17 = sbr.rel (0) target = $region9
  $region8: #{mlp_forward.1} parent=0 // pred_region
    _
  $region9: #{mlp_forward.1} parent=0 // pred_fallthru
    _
  // Predicated region
  $region10: #{mlp_forward.1} parent=0 // pred_check
    _
  $region11: #{mlp_forward.1} parent=0 // pred_check_branch
    %19 = sbr.rel (0) target = $region13
  $region12: #{mlp_forward.1} parent=0 // pred_region
    _
  $region13: #{mlp_forward.1} parent=0 // pred_fallthru
    _
  // Predicated region
  $region14: #{mlp_forward.1} parent=0 // pred_check
    _
  $region15: #{mlp_forward.1} parent=0 // pred_check_branch
    %21 = sbr.rel (0) target = $region17
  $region16: #{mlp_forward.1} parent=0 // pred_region
    _
  $region17: #{mlp_forward.1} parent=0 // pred_fallthru
    _
  // Predicated region
  $region18: #{mlp_forward.1} parent=0 // pred_check
    _
  $region19: #{mlp_forward.1} parent=0 // pred_check_branch
    %23 = sbr.rel (0) target = $region21
  $region20: #{mlp_forward.1} parent=0 // pred_region
    _
  $region21: #{mlp_forward.1} parent=0 // pred_fallthru
    _
  // Predicated region
  $region22: #{mlp_forward.1} parent=0 // pred_check
    _
  $region23: #{mlp_forward.1} parent=0 // pred_check_branch
    %25 = sbr.rel (0) target = $region25
  $region24: #{mlp_forward.1} parent=0 // pred_region
    _
  $region25: #{mlp_forward.1} parent=0 // pred_fallthru
    _
  // Predicated region
  $region26: #{mlp_forward.1} parent=0 // pred_check
    _
  $region27: #{mlp_forward.1} parent=0 // pred_check_branch
    %27 = sbr.rel (0) target = $region29
  $region28: #{mlp_forward.1} parent=0 // pred_region
    _
  $region29: #{mlp_forward.1} parent=0 // pred_fallthru
    _
  // Predicated region
  $region30: #{mlp_forward.1} parent=0 // pred_check
    _
  $region31: #{mlp_forward.1} parent=0 // pred_check_branch
    %29 = sbr.rel (0) target = $region33
  $region32: #{mlp_forward.1} parent=0 // pred_region
    _
  $region33: #{mlp_forward.1} parent=0 // pred_fallthru
    _
  // Predicated region
  $region34: #{mlp_forward.1} parent=0 // pred_check
    _
  $region35: #{mlp_forward.1} parent=0 // pred_check_branch
    %31 = sbr.rel (0) target = $region37
  $region36: #{mlp_forward.1} parent=0 // pred_region
    _
  $region37: #{mlp_forward.1} parent=0 // pred_fallthru
    _
  %v32 = vld [vmem:[%s0] sm:$0xff]
  %v33 = vld [vmem:[%s1] sm:$0xff]
  %v34 = vld [vmem:[%s1 + $0x8] sm:$0xff]
  %v35 = vld [vmem:[%s1 + $0x10] sm:$0xff]
  %v36 = vld [vmem:[%s1 + $0x18] sm:$0xff]
  %v37 = vld [vmem:[%s1 + $0x20] sm:$0xff]
  %v38 = vld [vmem:[%s1 + $0x28] sm:$0xff]
  %v39 = vld [vmem:[%s1 + $0x30] sm:$0xff]
  %v40 = vld [vmem:[%s1 + $0x38] sm:$0xff]
  %v41 = vld [vmem:[%s1 + $0x40] sm:$0xff]
  %v42 = vld [vmem:[%s1 + $0x48] sm:$0xff]
  %v43 = vld [vmem:[%s1 + $0x50] sm:$0xff]
  %v44 = vld [vmem:[%s1 + $0x58] sm:$0xff]
  %v45 = vld [vmem:[%s1 + $0x60] sm:$0xff]
  %v46 = vld [vmem:[%s1 + $0x68] sm:$0xff]
  %v47 = vld [vmem:[%s1 + $0x70] sm:$0xff]
  %v48 = vld [vmem:[%s1 + $0x78] sm:$0xff]
  %v49 = vld [vmem:[%s2] sm:$0x1]
  %v51 = vperm.slane %v49, 0
  %53 = vmatpush.msra.mxu0 %v48
  %54 = vmatpush.msra.mxu0 %v47
  %55 = vmatpush.msra.mxu0 %v46
  %56 = vmatpush.msra.mxu0 %v45
  %57 = vmatpush.msra.mxu0 %v44
  %58 = vmatpush.msra.mxu0 %v43
  %59 = vmatpush.msra.mxu0 %v42
  %60 = vmatpush.msra.mxu0 %v41
  %61 = vmatpush.msra.mxu0 %v40
  %62 = vmatpush.msra.mxu0 %v39
  %63 = vmatpush.msra.mxu0 %v38
  %64 = vmatpush.msra.mxu0 %v37
  %65 = vmatpush.msra.mxu0 %v36
  %66 = vmatpush.msra.mxu0 %v35
  %67 = vmatpush.msra.mxu0 %v34
  %68 = vmatpush.msra.mxu0 %v33
  %69 = vmatmul.f32.gmra.mxu0 %v32
  %v70 = vpop.f32.mrf.mxu0
  %v71 = vadd.f32 %v51, %v70
  %72 = vdwg.mxu0
  %v73 = vtanh.pop %v71
  %v74 = vld [vmem:[%s3] sm:$0xff]
  %v75 = vld [vmem:[%s3 + $0x8] sm:$0xff]
  %v76 = vld [vmem:[%s3 + $0x10] sm:$0xff]
  %v77 = vld [vmem:[%s3 + $0x18] sm:$0xff]
  %v78 = vld [vmem:[%s3 + $0x20] sm:$0xff]
  %v79 = vld [vmem:[%s3 + $0x28] sm:$0xff]
  %v80 = vld [vmem:[%s3 + $0x30] sm:$0xff]
  %v81 = vld [vmem:[%s3 + $0x38] sm:$0xff]
  %v82 = vld [vmem:[%s3 + $0x40] sm:$0xff]
  %v83 = vld [vmem:[%s3 + $0x48] sm:$0xff]
  %v84 = vld [vmem:[%s3 + $0x50] sm:$0xff]
  %v85 = vld [vmem:[%s3 + $0x58] sm:$0xff]
  %v86 = vld [vmem:[%s3 + $0x60] sm:$0xff]
  %v87 = vld [vmem:[%s3 + $0x68] sm:$0xff]
  %v88 = vld [vmem:[%s3 + $0x70] sm:$0xff]
  %v89 = vld [vmem:[%s3 + $0x78] sm:$0xff]
  %v90 = vld [vmem:[%s4] sm:$0x1]
  %v92 = vperm.slane %v90, 0
  %94 = vmatpush.msra.mxu0 %v89
  %95 = vmatpush.msra.mxu0 %v88
  %96 = vmatpush.msra.mxu0 %v87
  %97 = vmatpush.msra.mxu0 %v86
  %98 = vmatpush.msra.mxu0 %v85
  %99 = vmatpush.msra.mxu0 %v84
  %100 = vmatpush.msra.mxu0 %v83
  %101 = vmatpush.msra.mxu0 %v82
  %102 = vmatpush.msra.mxu0 %v81
  %103 = vmatpush.msra.mxu0 %v80
  %104 = vmatpush.msra.mxu0 %v79
  %105 = vmatpush.msra.mxu0 %v78
  %106 = vmatpush.msra.mxu0 %v77
  %107 = vmatpush.msra.mxu0 %v76
  %108 = vmatpush.msra.mxu0 %v75
  %109 = vmatpush.msra.mxu0 %v74
  %110 = vmatmul.f32.gmra.mxu0 %v73
  %v111 = vpop.f32.mrf.mxu0
  %v112 = vadd.f32 %v92, %v111
  %113 = vdwg.mxu0
  %v114 = vtanh.pop %v112
  %v115 = vld [vmem:[%s5] sm:$0xff]
  %v116 = vld [vmem:[%s5 + $0x8] sm:$0xff]
  %v117 = vld [vmem:[%s5 + $0x10] sm:$0xff]
  %v118 = vld [vmem:[%s5 + $0x18] sm:$0xff]
  %v119 = vld [vmem:[%s5 + $0x20] sm:$0xff]
  %v120 = vld [vmem:[%s5 + $0x28] sm:$0xff]
  %v121 = vld [vmem:[%s5 + $0x30] sm:$0xff]
  %v122 = vld [vmem:[%s5 + $0x38] sm:$0xff]
  %v123 = vld [vmem:[%s5 + $0x40] sm:$0xff]
  %v124 = vld [vmem:[%s5 + $0x48] sm:$0xff]
  %v125 = vld [vmem:[%s5 + $0x50] sm:$0xff]
  %v126 = vld [vmem:[%s5 + $0x58] sm:$0xff]
  %v127 = vld [vmem:[%s5 + $0x60] sm:$0xff]
  %v128 = vld [vmem:[%s5 + $0x68] sm:$0xff]
  %v129 = vld [vmem:[%s5 + $0x70] sm:$0xff]
  %v130 = vld [vmem:[%s5 + $0x78] sm:$0xff]
  %v131 = vld [vmem:[%s6] sm:$0x1]
  %v133 = vperm.slane %v131, 0
  %135 = vmatpush.msra.mxu0 %v130
  %136 = vmatpush.msra.mxu0 %v129
  %137 = vmatpush.msra.mxu0 %v128
  %138 = vmatpush.msra.mxu0 %v127
  %139 = vmatpush.msra.mxu0 %v126
  %140 = vmatpush.msra.mxu0 %v125
  %141 = vmatpush.msra.mxu0 %v124
  %142 = vmatpush.msra.mxu0 %v123
  %143 = vmatpush.msra.mxu0 %v122
  %144 = vmatpush.msra.mxu0 %v121
  %145 = vmatpush.msra.mxu0 %v120
  %146 = vmatpush.msra.mxu0 %v119
  %147 = vmatpush.msra.mxu0 %v118
  %148 = vmatpush.msra.mxu0 %v117
  %149 = vmatpush.msra.mxu0 %v116
  %150 = vmatpush.msra.mxu0 %v115
  %151 = vmatmul.f32.gmra.mxu0 %v114
  %v152 = vpop.f32.mrf.mxu0
  %v153 = vadd.f32 %v133, %v152
  %154 = vdwg.mxu0
  %v155 = vtanh.pop %v153
  %v156 = vld [vmem:[%s7] sm:$0xff]
  %v157 = vld [vmem:[%s7 + $0x8] sm:$0xff]
  %v158 = vld [vmem:[%s7 + $0x10] sm:$0xff]
  %v159 = vld [vmem:[%s7 + $0x18] sm:$0xff]
  %v160 = vld [vmem:[%s7 + $0x20] sm:$0xff]
  %v161 = vld [vmem:[%s7 + $0x28] sm:$0xff]
  %v162 = vld [vmem:[%s7 + $0x30] sm:$0xff]
  %v163 = vld [vmem:[%s7 + $0x38] sm:$0xff]
  %v164 = vld [vmem:[%s7 + $0x40] sm:$0xff]
  %v165 = vld [vmem:[%s7 + $0x48] sm:$0xff]
  %v166 = vld [vmem:[%s7 + $0x50] sm:$0xff]
  %v167 = vld [vmem:[%s7 + $0x58] sm:$0xff]
  %v168 = vld [vmem:[%s7 + $0x60] sm:$0xff]
  %v169 = vld [vmem:[%s7 + $0x68] sm:$0xff]
  %v170 = vld [vmem:[%s7 + $0x70] sm:$0xff]
  %v171 = vld [vmem:[%s7 + $0x78] sm:$0xff]
  %v172 = vld [vmem:[%s8] sm:$0x1]
  %v174 = vperm.slane %v172, 0
  %176 = vmatpush.msra.mxu0 %v171
  %177 = vmatpush.msra.mxu0 %v170
  %178 = vmatpush.msra.mxu0 %v169
  %179 = vmatpush.msra.mxu0 %v168
  %180 = vmatpush.msra.mxu0 %v167
  %181 = vmatpush.msra.mxu0 %v166
  %182 = vmatpush.msra.mxu0 %v165
  %183 = vmatpush.msra.mxu0 %v164
  %184 = vmatpush.msra.mxu0 %v163
  %185 = vmatpush.msra.mxu0 %v162
  %186 = vmatpush.msra.mxu0 %v161
  %187 = vmatpush.msra.mxu0 %v160
  %188 = vmatpush.msra.mxu0 %v159
  %189 = vmatpush.msra.mxu0 %v158
  %190 = vmatpush.msra.mxu0 %v157
  %191 = vmatpush.msra.mxu0 %v156
  %192 = vmatmul.f32.gmra.mxu0 %v155
  %v193 = vpop.f32.mrf.mxu0
  %v194 = vadd.f32 %v174, %v193
  %195 = vdwg.mxu0
  %196 = vst [vmem:[%s9] sm:$0xff] %v194
  // Predicated region
  $region38: #{mlp_forward.1} parent=0 // pred_check
    _
  $region39: #{mlp_forward.1} parent=0 // pred_check_branch
    %198 = sbr.rel (0) target = $region41
  $region40: #{mlp_forward.1} parent=0 // pred_region
    _
  $region41: #{mlp_forward.1} parent=0 // pred_fallthru
    _
  // Predicated region
  $region42: #{mlp_forward.1} parent=0 // pred_check
    _
  $region43: #{mlp_forward.1} parent=0 // pred_check_branch
    %200 = sbr.rel (0) target = $region45
  $region44: #{mlp_forward.1} parent=0 // pred_region
    _
  $region45: #{mlp_forward.1} parent=0 // pred_fallthru
    _

</llo_original>
